<compile_context>
chip_gen: v5e
topology: v5e:2x2
jax: 0.10.0
libtpu: 0.0.40
codegen_flags: <defaults>
</compile_context>

<pallas_src>
import functools

import jax
import jax.numpy as jnp
from jax import lax
from jax.experimental import pallas as pl
from jax.experimental.pallas import tpu as pltpu

_LANE = 128
_SINGLE_TILE_MAX = 256   # batches up to this run as one full-extent block
_TILE_ROWS_CAP = 2048    # upper bound on rows of X per grid step


def _ueca_kernel(x_ref, plmat_ref, probs_ref, proj_ref, *, num_clusters):
    # MXU matmul: bf16 operands (in-kernel cast), f32 accumulation.  Columns
    # >= num_clusters of PL are zero padding (lane alignment only).
    x = x_ref[...].astype(jnp.bfloat16)
    proj = jnp.dot(x, plmat_ref[...], preferred_element_type=jnp.float32)

    # Store only the real cluster columns (unpadded HBM writeback).
    proj_ref[...] = proj[:, :num_clusters]

    # Numerically stable row softmax over the real columns; padded lanes are
    # folded into a single -inf mask so exp() zeroes them (no second select).
    col = lax.broadcasted_iota(jnp.int32, proj.shape, 1)
    proj_m = jnp.where(col < num_clusters, proj, -jnp.inf)
    m = jnp.max(proj_m, axis=1, keepdims=True)
    e = jnp.exp(proj_m - m)
    denom = jnp.sum(e, axis=1, keepdims=True)
    probs_ref[...] = (e / denom)[:, :num_clusters]   # exact normalization


def _round_up(x, m):
    return ((x + m - 1) // m) * m


def _vmem_budget_bytes():
    # Generation-aware budget: ~3/4 of physical VMEM (~48 MiB on v7x's
    # 64 MiB/TC, ~96 MiB on v5e/v6e's 128 MiB).
    try:
        cap = int(pltpu.get_tpu_info().vmem_capacity_bytes)
    except Exception:
        cap = 64 * 1024 * 1024
    return (cap * 3) // 4


def _pick_tile_rows(input_dim, nc_pad, num_clusters, x_itemsize, budget):
    # VMEM per row of a batch tile: double-buffered X tile + double-buffered
    # f32 probs/proj output tiles + the in-kernel f32 (tb, nc_pad) proj slab.
    per_row = (2 * input_dim * x_itemsize
               + 2 * 2 * num_clusters * 4
               + 2 * nc_pad * 4)
    fixed = 2 * input_dim * nc_pad * 2   # double-buffered bf16 PL (grid-invariant)
    avail = max(budget - fixed, per_row * 8)
    tb = min(_TILE_ROWS_CAP, avail // per_row)
    return max(8, int(tb // 8) * 8)


def ueca_forward(X, A_raw, D_vec, L_raw):
    """Pure-JAX wrapper matching UnsupervisedEigenComponentAnalysis.forward.

    Returns (probs, prob, P, proj), like the PyTorch module (prob aliases the
    raw projection, exactly as in the reference forward).
    """
    input_dim = A_raw.shape[0]
    num_clusters = L_raw.shape[1]
    batch = X.shape[0]

    # ---- parameter-only glue (off the data hot path) -----------------------
    # TODO(synk): torch.matrix_exp has no in-kernel Pallas equivalent; computed
    # on the (input_dim, input_dim) parameters with jax.scipy.linalg.expm.
    A32 = A_raw.astype(jnp.float32)
    A = A32 - A32.T + jnp.diag(D_vec.astype(jnp.float32))
    P = jax.scipy.linalg.expm(A)
    L = jax.nn.sigmoid(L_raw.astype(jnp.float32))
    PL = P @ L  # (input_dim, num_clusters)

    # Lane-pad only PL's cluster axis to a multiple of 128 for the MXU; the
    # outputs stay unpadded (kernel slices the real columns before storing).
    nc_pad = _round_up(max(num_clusters, _LANE), _LANE)
    PL_bf = (jnp.zeros((input_dim, nc_pad), jnp.float32)
             .at[:, :num_clusters].set(PL)
             .astype(jnp.bfloat16))

    # ---- batch tiling -------------------------------------------------------
    x_itemsize = jnp.dtype(X.dtype).itemsize
    max_rows = _pick_tile_rows(input_dim, nc_pad, num_clusters, x_itemsize,
                               _vmem_budget_bytes())
    if batch <= _SINGLE_TILE_MAX:
        tb = batch                      # single full-extent block
        batch_pad = batch
    else:
        # At least two grid steps (v7x megacore sharding), capped by VMEM.
        tb = min(max_rows, _round_up(pl.cdiv(batch, 2), 16))
        batch_pad = _round_up(batch, tb)
    # TODO(synk): for very large input_dim (>~8K) add a K grid axis marked
    # "arbitrary" with a f32 VMEM accumulator instead of shrinking the tile.

    X_in = X if batch_pad == batch else jnp.pad(
        X, ((0, batch_pad - batch), (0, 0)))

    grid = (batch_pad // tb,)

    vmem_bytes = (2 * tb * input_dim * x_itemsize
                  + 2 * input_dim * nc_pad * 2
                  + 2 * 2 * tb * num_clusters * 4
                  + 2 * tb * nc_pad * 4)
    vmem_limit = int(min(max(2 * vmem_bytes, 16 * 1024 * 1024),
                         _vmem_budget_bytes()))

    kernel = functools.partial(_ueca_kernel, num_clusters=num_clusters)

    probs_p, proj_p = pl.pallas_call(
        kernel,
        out_shape=(
            jax.ShapeDtypeStruct((batch_pad, num_clusters), jnp.float32),
            jax.ShapeDtypeStruct((batch_pad, num_clusters), jnp.float32),
        ),
        grid=grid,
        in_specs=[
            pl.BlockSpec((tb, input_dim), lambda i: (i, 0)),
            # Grid-invariant PL tile (constant index_map across the grid).
            pl.BlockSpec((input_dim, nc_pad), lambda i: (0, 0)),
        ],
        out_specs=(
            pl.BlockSpec((tb, num_clusters), lambda i: (i, 0)),
            pl.BlockSpec((tb, num_clusters), lambda i: (i, 0)),
        ),
        compiler_params=pltpu.CompilerParams(
            dimension_semantics=("parallel",),
            vmem_limit_bytes=vmem_limit,
        ),
    )(X_in, PL_bf)

    probs = probs_p if batch_pad == batch else probs_p[:batch]
    proj = proj_p if batch_pad == batch else proj_p[:batch]
    prob = proj  # PyTorch forward returns the raw projection under both names
    return probs, prob, P, proj


if __name__ == "__main__":
    # Small deterministic setup consistent with the module.
    batch = 8
    input_dim = 32
    num_clusters = 8

    key = jax.random.PRNGKey(0)
    k_x, k_a, k_l = jax.random.split(key, 3)

    X = jax.random.normal(k_x, (batch, input_dim), dtype=jnp.float32)
    A_raw = jax.random.normal(k_a, (input_dim, input_dim), dtype=jnp.float32)
    D_vec = jnp.ones((input_dim,), dtype=jnp.float32)
    L_raw = jax.random.normal(k_l, (input_dim, num_clusters), dtype=jnp.float32)

    probs, prob, P, proj = ueca_forward(X, A_raw, D_vec, L_raw)
    jax.block_until_ready((probs, prob, P, proj))

    # Shape / finiteness / normalization checks.
    assert probs.shape == (batch, num_clusters)
    assert prob.shape == (batch, num_clusters)
    assert proj.shape == (batch, num_clusters)
    assert P.shape == (input_dim, input_dim)
    assert bool(jnp.all(jnp.isfinite(probs)))
    assert bool(jnp.all(jnp.isfinite(proj)))
    assert bool(jnp.allclose(jnp.sum(probs, axis=1), 1.0, atol=1e-3))

    # Pure-JAX reference in matching precision (bf16 operands, f32 accumulate).
    A_ref = A_raw - A_raw.T + jnp.diag(D_vec)
    PL_ref = jax.scipy.linalg.expm(A_ref) @ jax.nn.sigmoid(L_raw)
    proj_ref = jnp.dot(X.astype(jnp.bfloat16), PL_ref.astype(jnp.bfloat16),
                       preferred_element_type=jnp.float32)
    probs_ref = jax.nn.softmax(proj_ref, axis=1)
    assert bool(jnp.allclose(proj, proj_ref, atol=5e-2, rtol=5e-2))
    assert bool(jnp.allclose(probs, probs_ref, atol=5e-2))

    print("KERNEL_OK")
</pallas_src>

<mosaic_0001>
module attributes {stable_mosaic.version = 11 : i64} {
  func.func @_ueca_kernel(%arg0: i32, %arg1: memref<8x32xf32, #tpu.memory_space<vmem>>, %arg2: memref<32x128xbf16, #tpu.memory_space<vmem>>, %arg3: memref<8x8xf32, #tpu.memory_space<vmem>>, %arg4: memref<8x8xf32, #tpu.memory_space<vmem>>) attributes {dimension_semantics = [#tpu.dimension_semantics<parallel>], iteration_bounds = array<i64: 1>, scalar_prefetch = 0 : i64, scratch_operands = 0 : i64, tpu.core_type = #tpu.core_type<tc>, window_params = [{transform_indices = @transform_0, window_bounds = array<i64: 8, 32>}, {pipeline_mode = #tpu.pipeline_mode<synchronous>, transform_indices = @transform_1, window_bounds = array<i64: 32, 128>}, {transform_indices = @transform_2, window_bounds = array<i64: 8, 8>}, {transform_indices = @transform_3, window_bounds = array<i64: 8, 8>}]} {
    %c0 = arith.constant 0 : index
    %c0_0 = arith.constant 0 : index
    %0 = vector.load %arg1[%c0, %c0_0] : memref<8x32xf32, #tpu.memory_space<vmem>>, vector<8x32xf32>
    %1 = arith.truncf %0 : vector<8x32xf32> to vector<8x32xbf16>
    %c0_1 = arith.constant 0 : index
    %c0_2 = arith.constant 0 : index
    %2 = vector.load %arg2[%c0_1, %c0_2] : memref<32x128xbf16, #tpu.memory_space<vmem>>, vector<32x128xbf16>
    %cst = arith.constant dense<0.000000e+00> : vector<8x128xf32>
    %3 = tpu.matmul %1, %2, %cst {dimension_numbers = #tpu.dot_dimension_numbers<[1], [0], [0], [1], [0, 0, 1, 1], [], []>} : vector<8x32xbf16>, vector<32x128xbf16>, vector<8x128xf32> -> vector<8x128xf32>
    %4 = vector.extract_strided_slice %3 {offsets = [0, 0], sizes = [8, 8], strides = [1, 1]} : vector<8x128xf32> to vector<8x8xf32>
    %c0_3 = arith.constant 0 : index
    %c0_4 = arith.constant 0 : index
    %5 = vector.load %arg4[%c0_3, %c0_4] : memref<8x8xf32, #tpu.memory_space<vmem>>, vector<8x8xf32>
    tpu.vector_store %arg4[%c0_3, %c0_4], %4 {strides = array<i32>} : memref<8x8xf32, #tpu.memory_space<vmem>>, vector<8x8xf32>,
    %6 = tpu.iota {dimensions = array<i32: 1>} : vector<8x128xi32>
    %c8_i32 = arith.constant 8 : i32
    %7 = vector.broadcast %c8_i32 : i32 to vector<8x128xi32>
    %8 = arith.cmpi slt, %6, %7 : vector<8x128xi32>
    %cst_5 = arith.constant 0xFF800000 : f32
    %9 = vector.broadcast %cst_5 : f32 to vector<8x128xf32>
    %10 = arith.select %8, %3, %9 : vector<8x128xi1>, vector<8x128xf32>
    %cst_6 = arith.constant dense<0xFF800000> : vector<8xf32>
    %11 = vector.multi_reduction <maximumf>, %10, %cst_6 [1] : vector<8x128xf32> to vector<8xf32>
    %12 = vector.shape_cast %11 : vector<8xf32> to vector<8x1xf32>
    %13 = vector.broadcast %12 : vector<8x1xf32> to vector<8x128xf32>
    %14 = arith.subf %10, %13 : vector<8x128xf32>
    %15 = math.exp %14 : vector<8x128xf32>
    %cst_7 = arith.constant dense<0.000000e+00> : vector<8xf32>
    %16 = vector.multi_reduction <add>, %15, %cst_7 [1] : vector<8x128xf32> to vector<8xf32>
    %17 = vector.shape_cast %16 : vector<8xf32> to vector<8x1xf32>
    %18 = vector.broadcast %17 : vector<8x1xf32> to vector<8x128xf32>
    %19 = arith.divf %15, %18 : vector<8x128xf32>
    %20 = vector.extract_strided_slice %19 {offsets = [0, 0], sizes = [8, 8], strides = [1, 1]} : vector<8x128xf32> to vector<8x8xf32>
    %c0_8 = arith.constant 0 : index
    %c0_9 = arith.constant 0 : index
    %21 = vector.load %arg3[%c0_8, %c0_9] : memref<8x8xf32, #tpu.memory_space<vmem>>, vector<8x8xf32>
    tpu.vector_store %arg3[%c0_8, %c0_9], %20 {strides = array<i32>} : memref<8x8xf32, #tpu.memory_space<vmem>>, vector<8x8xf32>,
    return
  }
  func.func @transform_0(%arg0: i32) -> (i32, i32) {
    %c0_i32 = arith.constant 0 : i32
    %c0_i32_0 = arith.constant 0 : i32
    return %arg0, %c0_i32 : i32, i32
  }
  func.func @transform_1(%arg0: i32) -> (i32, i32) {
    %c0_i32 = arith.constant 0 : i32
    %c0_i32_0 = arith.constant 0 : i32
    %c0_i32_1 = arith.constant 0 : i32
    return %c0_i32, %c0_i32_0 : i32, i32
  }
  func.func @transform_2(%arg0: i32) -> (i32, i32) {
    %c0_i32 = arith.constant 0 : i32
    %c0_i32_0 = arith.constant 0 : i32
    return %arg0, %c0_i32 : i32, i32
  }
  func.func @transform_3(%arg0: i32) -> (i32, i32) {
    %c0_i32 = arith.constant 0 : i32
    %c0_i32_0 = arith.constant 0 : i32
    return %arg0, %c0_i32 : i32, i32
  }
}

</mosaic_0001>

<llo_original>
// kernel: tpu_custom_call.1
$region0: #{tpu_custom_call.1}
  #allocation0 [shape = 'u32[]', space=smem, size = 0x4, offset = 0x4, fixed_abs, tag = 'smem constant byte address 0x4 - core index']
  #allocation1 [shape = 'u32[72,128]{1,0:T(1,128)}', space=vmem, size = 0x9000, scoped, tag = 'internal scratch']
  %s0 = inlined_call_operand.hbm [shape: f32[8,32], index: 0, kind: input, shape index: {}]
  %s1 = inlined_call_operand.hbm [shape: bf16[32,128], index: 1, kind: input, shape index: {}]
  %s2 = inlined_call_operand.hbm [shape: f32[8,8], index: 2, kind: output, shape index: {0}]
  %s3 = inlined_call_operand.hbm [shape: f32[8,8], index: 3, kind: output, shape index: {1}]
  %4 = xla_tuple %s2, %s3
  %s5 = sld [smem:[#allocation0]]
  $region34: #{tpu_custom_call.1} parent=0
    _
  %s7 = ssub.s32 1, %s5
  %s8 = scalar_select 0, %s7, %s5
  $region1: #{tpu_custom_call.1} parent=0
    #allocation2 [shape = 'u8[4096]{0}', space=vmem, size = 0x1000, scoped, tag = 'input window, operand 0, single buffered']
    #allocation3 [shape = 's32[1]{0}', space=sflag, size = 0x4, scoped, tag = 'scoped memory for tpu_custom_call.1']
    #allocation4 [shape = 's32[1]{0}', space=sflag, size = 0x4, scoped, tag = 'scoped memory for tpu_custom_call.1']
    #allocation5 [shape = 'u8[8192]{0}', space=vmem, size = 0x2000, scoped, tag = 'input window, operand 1, single buffered']
    #allocation6 [shape = 's32[1]{0}', space=sflag, size = 0x4, scoped, tag = 'scoped memory for tpu_custom_call.1']
    #allocation7 [shape = 'u8[4096]{0}', space=vmem, size = 0x1000, scoped, tag = 'output window, operand 0, single buffered']
    #allocation8 [shape = 'u8[4096]{0}', space=vmem, size = 0x1000, scoped, tag = 'output window, operand 1, single buffered']
    #allocation9 [shape = 's32[1]{0}', space=sflag, size = 0x4, scoped, tag = 'scoped memory for tpu_custom_call.1']
    %9 = vsyncpa [#allocation3], 0
    %10 = vsyncpa [#allocation6], 0
    %11 = vsyncpa [#allocation4], 0
    %12 = vsyncpa [#allocation9], 0
    // Predicated region
    $region2: #{tpu_custom_call.1} parent=1 // pred_check
      _
    $region3: #{tpu_custom_call.1} parent=1 // pred_check_branch
      %14 = sbr.rel (0) target = $region5
    $region4: #{tpu_custom_call.1} parent=1 // pred_region
      %16 = vsyncadd [#allocation3], 0
      %s18 = sshll.u32 %s0, 4
      %s19 = int_to_ptr.hbm [resolvable:$true] %s18
      %s20 = sshll.u32 [#allocation2], 4
      %s21 = int_to_ptr.vmem [resolvable:$true] %s20
      %23 = dma.hbm_to_vmem [thread:$0]  %s19, 128, %s21, [#allocation3]
    $region5: #{tpu_custom_call.1} parent=1 // pred_fallthru
      _
    // Predicated region
    $region6: #{tpu_custom_call.1} parent=1 // pred_check
      _
    $region7: #{tpu_custom_call.1} parent=1 // pred_check_branch
      %25 = sbr.rel (0) target = $region9
    $region8: #{tpu_custom_call.1} parent=1 // pred_region
      %27 = vsyncadd [#allocation6], 0
      %s28 = sshll.u32 %s1, 4
      %s29 = int_to_ptr.hbm [resolvable:$true] %s28
      %s30 = sshll.u32 [#allocation5], 4
      %s31 = int_to_ptr.vmem [resolvable:$true] %s30
      %36 = dma.hbm_to_vmem [thread:$0]  %s29, 256, %s31, [#allocation6], 64, 64, 4
    $region9: #{tpu_custom_call.1} parent=1 // pred_fallthru
      _
    // Predicated region
    $region10: #{tpu_custom_call.1} parent=1 // pred_check
      _
    $region11: #{tpu_custom_call.1} parent=1 // pred_check_branch
      %38 = sbr.rel (0) target = $region13
    $region12: #{tpu_custom_call.1} parent=1 // pred_region
      %40 = dma.done [#allocation3], 128
    $region13: #{tpu_custom_call.1} parent=1 // pred_fallthru
      _
    // Predicated region
    $region14: #{tpu_custom_call.1} parent=1 // pred_check
      _
    $region15: #{tpu_custom_call.1} parent=1 // pred_check_branch
      %42 = sbr.rel (0) target = $region17
    $region16: #{tpu_custom_call.1} parent=1 // pred_region
      %44 = dma.done [#allocation6], 256
    $region17: #{tpu_custom_call.1} parent=1 // pred_fallthru
      _
    %v46 = vld [vmem:[#allocation2] sm:$0xff]
    %v47 = vpack.c.bf16 %v46, %v46
    %v48 = vld [vmem:[#allocation5] sm:$0xf]
    %v49 = vld [vmem:[#allocation5 + $0x4] sm:$0xf]
    %v50 = vld [vmem:[#allocation5 + $0x8] sm:$0xf]
    %v51 = vld [vmem:[#allocation5 + $0xc] sm:$0xf]
    %v56 = vunpack.c.l.b16 %v48
    %v57 = vunpack.c.l.b16 %v49
    %v58 = vunpack.c.l.b16 %v50
    %v59 = vunpack.c.l.b16 %v51
    %v60 = vpack.c.b16 %v57, %v56
    %v61 = vpack.c.b16 %v59, %v58
    %vm64 = vcmask 261120
    %v66 = vsel %vm64, %v47, 0
    %68 = vmatpush.bf16.msra.mxu0 0
    %69 = vmatpush.bf16.msra.mxu0 0
    %70 = vmatpush.bf16.msra.mxu0 0
    %71 = vmatpush.bf16.msra.mxu0 0
    %72 = vmatpush.bf16.msra.mxu0 0
    %73 = vmatpush.bf16.msra.mxu0 0
    %74 = vmatpush.bf16.msra.mxu0 %v61
    %75 = vmatpush.bf16.msra.mxu0 %v60
    %76 = vmatmul.bf16.gmra.mxu0 %v66
    %v77 = vpop.f32.mrf.mxu0
    %v78 = vadd.f32 0.0, %v77
    %v79 = vpop.f32.mrf.mxu0
    %80 = vdwg.mxu0
    %vm81 = vcmask 64512
    %82 = vst.msk [vmem:[#allocation8] sm:$0xff] %vm81, %v78
    %v83 = vlaneseq
    %v84 = vand.u32 %v83, 127
    %vm85 = vcmp.lt.s32.totalorder %v84, 8
    %v86 = vsel %vm85, %v78, -inf
    %87 = vmax.xlane.f32.xlu0 %v86
    %v88 = vpop.xlane.xlu0 %87
    %v89 = vsub.f32 %v86, %v88
    %v90 = vmul.f32 %v89, 1.442695
    %v91 = vpow.pop %v90
    %92 = vadd.xlane.f32.xlu0 %v91
    %v93 = vpop.xlane.xlu0 %92
    %v94 = vrcp.pop %v93
    %v95 = vmul.f32 %v93, %v94
    %v96 = vsub.f32 1.0, %v95
    %v97 = vmul.f32 %v94, %v96
    %v98 = vadd.f32 %v94, %v97
    %vm99 = vweird.f32 %v93
    %vm100 = vweird.f32 %v94
    %vm101 = vmor %vm99, %vm100
    %v102 = vsel %vm101, %v94, %v98
    %v103 = vand.u32 2147483647, %v93
    %vm104 = vcmp.eq.f32.partialorder %v103, 8.507059e+37
    %v105 = vand.u32 %v93, 2147483648
    %v106 = vor.u32 1.1754944e-38, %v105
    %v107 = vsel %vm104, %v106, %v102
    %v108 = vmul.f32 %v91, %v107
    %109 = vst.msk [vmem:[#allocation7] sm:$0xff] %vm81, %v108
    // Predicated region
    $region18: #{tpu_custom_call.1} parent=1 // pred_check
      _
    $region19: #{tpu_custom_call.1} parent=1 // pred_check_branch
      %111 = sbr.rel (0) target = $region21
    $region20: #{tpu_custom_call.1} parent=1 // pred_region
      %113 = vsyncadd [#allocation4], 0
      %s115 = sshll.u32 [#allocation7], 4
      %s116 = int_to_ptr.vmem [resolvable:$true] %s115
      %s117 = sshll.u32 %s2, 4
      %s118 = int_to_ptr.hbm [resolvable:$true] %s117
      %120 = dma.vmem_to_hbm [thread:$0]  %s116, 128, %s118, [#allocation4]
    $region21: #{tpu_custom_call.1} parent=1 // pred_fallthru
      _
    // Predicated region
    $region22: #{tpu_custom_call.1} parent=1 // pred_check
      _
    $region23: #{tpu_custom_call.1} parent=1 // pred_check_branch
      %122 = sbr.rel (0) target = $region25
    $region24: #{tpu_custom_call.1} parent=1 // pred_region
      %124 = vsyncadd [#allocation9], 0
      %s126 = sshll.u32 [#allocation8], 4
      %s127 = int_to_ptr.vmem [resolvable:$true] %s126
      %s128 = sshll.u32 %s3, 4
      %s129 = int_to_ptr.hbm [resolvable:$true] %s128
      %131 = dma.vmem_to_hbm [thread:$0]  %s127, 128, %s129, [#allocation9]
    $region25: #{tpu_custom_call.1} parent=1 // pred_fallthru
      _
    // Predicated region
    $region26: #{tpu_custom_call.1} parent=1 // pred_check
      _
    $region27: #{tpu_custom_call.1} parent=1 // pred_check_branch
      %133 = sbr.rel (0) target = $region29
    $region28: #{tpu_custom_call.1} parent=1 // pred_region
      %135 = dma.done [#allocation4], 128
    $region29: #{tpu_custom_call.1} parent=1 // pred_fallthru
      _
    // Predicated region
    $region30: #{tpu_custom_call.1} parent=1 // pred_check
      _
    $region31: #{tpu_custom_call.1} parent=1 // pred_check_branch
      %137 = sbr.rel (0) target = $region33
    $region32: #{tpu_custom_call.1} parent=1 // pred_region
      %139 = dma.done [#allocation9], 128
    $region33: #{tpu_custom_call.1} parent=1 // pred_fallthru
      _
    %140 = vsyncpa [#allocation3], 1
    %141 = vsyncpa [#allocation6], 1
    %142 = vsyncpa [#allocation4], 1
    %143 = vsyncpa [#allocation9], 1

</llo_original>
